<compile_context>
chip_gen: v6e
topology: v6e:2x2x1
jax: 0.10.0
libtpu: 0.0.40
codegen_flags: <defaults>
</compile_context>

<pallas_src>
import functools

import numpy as np
import jax
import jax.numpy as jnp
from jax import lax
from jax.experimental import pallas as pl
from jax.experimental.pallas import tpu as pltpu

LEAKY_SLOPE = 0.05
BN_EPS = 1e-5


def _leaky(y):
    return jnp.where(y >= 0, y, LEAKY_SLOPE * y)


def _resblock_kernel(x_ref, w1_ref, w2_ref, w3_ref, aff_ref, b3_ref,
                     o_ref, pad_ref, *, NB, H, W, Cmid, dil):
    """One grid step = NB whole images in the row-packed layout
    (rows = image rows, lanes = W*C).  Every matmul operand and every
    store is lane-dense; no im2col / relayout copies."""
    M = NB * H
    WCm = W * Cmid
    Hp = H + 2 * dil

    # ---- conv1x1 (Cin -> Cmid) as a block-diagonal matmul, folded eval-BN
    # ---- affine, LeakyReLU(0.05) --------------------------------------------
    y1 = jnp.dot(x_ref[...], w1_ref[...], preferred_element_type=jnp.float32)
    y1 = y1 * aff_ref[0:1, :] + aff_ref[1:2, :]
    y1 = _leaky(y1)

    # ---- vertical halo only (horizontal padding is folded into w2's bands) --
    # Zeroing is unconditional so it stays correct when the "parallel" grid
    # axis is sharded across v7x's two TensorCores; the interior is fully
    # rewritten every step.
    pad_ref[:, 0:dil, :] = jnp.zeros((NB, dil, WCm), jnp.float32)
    pad_ref[:, dil + H:Hp, :] = jnp.zeros((NB, dil, WCm), jnp.float32)
    pad_ref[:, dil:dil + H, :] = y1.reshape(NB, H, WCm)

    # ---- dilated 3x3 conv (padding = dilation) as 3 banded matmuls ----------
    acc = jnp.zeros((M, WCm), jnp.float32)
    for ky in range(3):
        tap = pad_ref[:, ky * dil:ky * dil + H, :].reshape(M, WCm)
        acc = acc + jnp.dot(tap, w2_ref[ky * WCm:(ky + 1) * WCm, :],
                            preferred_element_type=jnp.float32)
    y2 = _leaky(acc * aff_ref[2:3, :] + aff_ref[3:4, :])

    # ---- conv1x1 (Cmid -> Cout) as a block-diagonal matmul + bias -----------
    # Output slab is (M, W*Cout): lane-dense, unmasked stores.
    o_ref[...] = (jnp.dot(y2, w3_ref[...], preferred_element_type=jnp.float32)
                  + b3_ref[...])


def resblock_pallas(x_nhwc, packed, *, dil):
    """x_nhwc: (N, H, W, Cin) channel-last.  Returns (N, H, W, Cout)."""
    N, H, W, Cin = x_nhwc.shape
    w1b, w2b, w3b, aff, b3t = packed
    WCin = W * Cin
    WCm = w1b.shape[1]
    WCo = w3b.shape[1]
    Cmid = WCm // W
    Cout = WCo // W
    assert w1b.shape == (WCin, WCm) and w2b.shape == (3 * WCm, WCm)

    # Rows per grid step = NB*H.  Target enough rows to amortize the ~0.35us
    # per-step overhead, but cap NB at N//2 so G >= 2 and v7x's second
    # TensorCore gets work (neutral on v5e/v6e).
    NB = max(1, min(N, max(1, 512 // H)))
    if N >= 2:
        NB = min(NB, N // 2)
    while N % NB:
        NB -= 1
    G = N // NB
    MB = NB * H

    x2d = x_nhwc.reshape(N * H, WCin)          # free reshape, no transpose

    # Explicit VMEM budget: double-buffered in/out blocks + resident weights
    # + pad scratch, with headroom (v7x physical VMEM is 64 MiB, default
    # scoped limit 32 MiB).
    blk_bytes = 4 * (MB * (WCin + WCo)
                     + WCin * WCm + 3 * WCm * WCm + WCm * WCo
                     + 4 * WCm + WCo)
    scratch_bytes = 4 * NB * (H + 2 * dil) * WCm
    vmem_limit = int(min(max(2 * blk_bytes + scratch_bytes + (4 << 20),
                             16 << 20), 48 << 20))

    kernel = functools.partial(_resblock_kernel, NB=NB, H=H, W=W,
                               Cmid=Cmid, dil=dil)

    out2d = pl.pallas_call(
        kernel,
        out_shape=jax.ShapeDtypeStruct((N * H, WCo), jnp.float32),
        grid_spec=pltpu.PrefetchScalarGridSpec(
            num_scalar_prefetch=0,
            grid=(G,),
            in_specs=[
                pl.BlockSpec((MB, WCin), lambda g: (g, 0)),
                pl.BlockSpec((WCin, WCm), lambda g: (0, 0)),
                pl.BlockSpec((3 * WCm, WCm), lambda g: (0, 0)),
                pl.BlockSpec((WCm, WCo), lambda g: (0, 0)),
                pl.BlockSpec((4, WCm), lambda g: (0, 0)),
                pl.BlockSpec((1, WCo), lambda g: (0, 0)),
            ],
            out_specs=pl.BlockSpec((MB, WCo), lambda g: (g, 0)),
            scratch_shapes=[
                pltpu.VMEM((NB, H + 2 * dil, WCm), jnp.float32)],
        ),
        compiler_params=pltpu.CompilerParams(
            dimension_semantics=("parallel",),
            vmem_limit_bytes=vmem_limit),
    )(x2d, w1b, w2b, w3b, aff, b3t)

    return out2d.reshape(N, H, W, Cout)


def pack_params(p, *, W, dil):
    """Fold conv biases + eval-mode BN into per-channel affines and repack the
    conv weights for the row-packed (lanes = W*C) layout:
      * 1x1 convs -> block-diagonal kron(I_W, w) matrices,
      * dilated 3x3 conv -> one banded matrix per kernel row ky, with the
        horizontal zero-padding folded into the band structure.
    One-time host-side prep per U-Net level (depends on W and dil)."""
    f32 = np.float32
    w_conv1 = np.asarray(p["w_conv1"], f32)            # (Cmid, Cin, 1, 1) OIHW
    w_conv2 = np.asarray(p["w_conv2"], f32)            # (Cmid, Cmid, 3, 3)
    w_conv3 = np.asarray(p["w_conv3"], f32)            # (Cout, Cmid, 1, 1)
    Cmid, Cin = w_conv1.shape[:2]
    Cout = w_conv3.shape[0]

    eye_w = np.eye(W, dtype=f32)
    w1b = np.kron(eye_w, w_conv1.reshape(Cmid, Cin).T)     # (W*Cin,  W*Cmid)
    w3b = np.kron(eye_w, w_conv3.reshape(Cout, Cmid).T)    # (W*Cmid, W*Cout)

    mats = []
    for ky in range(3):
        m = np.zeros((W * Cmid, W * Cmid), f32)
        for kx in range(3):
            # output column x reads input column x + (kx-1)*dil; columns that
            # fall outside [0, W) simply get no contribution (zero padding).
            shift = np.eye(W, k=-(kx - 1) * dil, dtype=f32)
            m += np.kron(shift, w_conv2[:, :, ky, kx].T)    # (ci, co) blocks
        mats.append(m)
    w2b = np.concatenate(mats, axis=0)                      # (3*W*Cmid, W*Cmid)

    def bn_affine(gamma, beta, rm, rv, bias):
        s = np.asarray(gamma, f32) / np.sqrt(np.asarray(rv, f32) + BN_EPS)
        t = (s * np.asarray(bias, f32) + np.asarray(beta, f32)
             - np.asarray(rm, f32) * s)
        return s, t

    s1, t1 = bn_affine(p["gamma1"], p["beta1"], p["rm1"], p["rv1"], p["b_conv1"])
    s2, t2 = bn_affine(p["gamma2"], p["beta2"], p["rm2"], p["rv2"], p["b_conv2"])
    aff = np.stack([np.tile(s1, W), np.tile(t1, W),
                    np.tile(s2, W), np.tile(t2, W)])        # (4, W*Cmid)
    b3t = np.tile(np.asarray(p["b_conv3"], f32), W)[None, :]  # (1, W*Cout)

    return tuple(jnp.asarray(a) for a in (w1b, w2b, w3b, aff, b3t))


def resblock_reference(x_nhwc, p, *, dil):
    """Pure-JAX NHWC reference mirroring the PyTorch ResBlock (BN eval mode)."""
    dn = ("NHWC", "HWIO", "NHWC")

    def hwio(w):
        return jnp.transpose(w, (2, 3, 1, 0))

    def bn(y, gamma, beta, rm, rv):
        inv = gamma / jnp.sqrt(rv + BN_EPS)
        return y * inv + (beta - rm * inv)

    y = lax.conv_general_dilated(x_nhwc, hwio(p["w_conv1"]), (1, 1), "VALID",
                                 dimension_numbers=dn)
    y = _leaky(bn(y + p["b_conv1"], p["gamma1"], p["beta1"], p["rm1"], p["rv1"]))
    y = lax.conv_general_dilated(y, hwio(p["w_conv2"]), (1, 1),
                                 [(dil, dil), (dil, dil)],
                                 rhs_dilation=(dil, dil), dimension_numbers=dn)
    y = _leaky(bn(y + p["b_conv2"], p["gamma2"], p["beta2"], p["rm2"], p["rv2"]))
    y = lax.conv_general_dilated(y, hwio(p["w_conv3"]), (1, 1), "VALID",
                                 dimension_numbers=dn)
    return y + p["b_conv3"]


def make_params(key, Cin, Cout, reduce):
    Cmid = Cin // reduce
    ks = jax.random.split(key, 15)
    f32 = jnp.float32
    p = dict(
        w_conv1=0.1 * jax.random.normal(ks[0], (Cmid, Cin, 1, 1), f32),
        b_conv1=0.1 * jax.random.normal(ks[1], (Cmid,), f32),
        gamma1=1.0 + 0.1 * jax.random.normal(ks[2], (Cmid,), f32),
        beta1=0.1 * jax.random.normal(ks[3], (Cmid,), f32),
        rm1=0.1 * jax.random.normal(ks[4], (Cmid,), f32),
        rv1=0.5 + jnp.abs(jax.random.normal(ks[5], (Cmid,), f32)) * 0.2,
        w_conv2=0.1 * jax.random.normal(ks[6], (Cmid, Cmid, 3, 3), f32),
        b_conv2=0.1 * jax.random.normal(ks[7], (Cmid,), f32),
        gamma2=1.0 + 0.1 * jax.random.normal(ks[8], (Cmid,), f32),
        beta2=0.1 * jax.random.normal(ks[9], (Cmid,), f32),
        rm2=0.1 * jax.random.normal(ks[10], (Cmid,), f32),
        rv2=0.5 + jnp.abs(jax.random.normal(ks[11], (Cmid,), f32)) * 0.2,
        w_conv3=0.1 * jax.random.normal(ks[12], (Cout, Cmid, 1, 1), f32),
        b_conv3=0.1 * jax.random.normal(ks[13], (Cout,), f32),
    )
    return p, ks[14]


if __name__ == "__main__":
    # ResBlock(filters_in=32, filters_out=32, dilate_val=2, reduce=4),
    # channel-last (NHWC) activations throughout — no layout transposes.
    N, Cin, Cout, H, W = 2, 32, 32, 16, 16
    reduce, dilate_val = 4, 2

    key = jax.random.PRNGKey(0)
    params, key_x = make_params(key, Cin, Cout, reduce)
    x = jax.random.normal(key_x, (N, H, W, Cin), jnp.float32)

    packed = pack_params(params, W=W, dil=dilate_val)
    out = jax.block_until_ready(resblock_pallas(x, packed, dil=dilate_val))

    ref = jax.block_until_ready(resblock_reference(x, params, dil=dilate_val))
    max_err = float(jnp.max(jnp.abs(out - ref)))
    assert out.shape == (N, H, W, Cout), out.shape
    assert max_err < 1e-3, f"max abs error {max_err}"

    print("KERNEL_OK")
</pallas_src>

<mosaic_0001>
module attributes {stable_mosaic.version = 11 : i64} {
  func.func @_resblock_kernel(%arg0: i32, %arg1: memref<16x512xf32, #tpu.memory_space<vmem>>, %arg2: memref<512x128xf32, #tpu.memory_space<vmem>>, %arg3: memref<384x128xf32, #tpu.memory_space<vmem>>, %arg4: memref<128x512xf32, #tpu.memory_space<vmem>>, %arg5: memref<4x128xf32, #tpu.memory_space<vmem>>, %arg6: memref<1x512xf32, #tpu.memory_space<vmem>>, %arg7: memref<16x512xf32, #tpu.memory_space<vmem>>, %arg8: memref<1x20x128xf32, #tpu.memory_space<vmem>>) attributes {dimension_semantics = [#tpu.dimension_semantics<parallel>], iteration_bounds = array<i64: 2>, scalar_prefetch = 0 : i64, scratch_operands = 1 : i64, tpu.core_type = #tpu.core_type<tc>, window_params = [{transform_indices = @transform_0, window_bounds = array<i64: 16, 512>}, {pipeline_mode = #tpu.pipeline_mode<synchronous>, transform_indices = @transform_1, window_bounds = array<i64: 512, 128>}, {pipeline_mode = #tpu.pipeline_mode<synchronous>, transform_indices = @transform_2, window_bounds = array<i64: 384, 128>}, {pipeline_mode = #tpu.pipeline_mode<synchronous>, transform_indices = @transform_3, window_bounds = array<i64: 128, 512>}, {pipeline_mode = #tpu.pipeline_mode<synchronous>, transform_indices = @transform_4, window_bounds = array<i64: 4, 128>}, {pipeline_mode = #tpu.pipeline_mode<synchronous>, transform_indices = @transform_5, window_bounds = array<i64: 1, 512>}, {transform_indices = @transform_6, window_bounds = array<i64: 16, 512>}]} {
    %c0 = arith.constant 0 : index
    %c0_0 = arith.constant 0 : index
    %0 = vector.load %arg1[%c0, %c0_0] : memref<16x512xf32, #tpu.memory_space<vmem>>, vector<16x512xf32>
    %c0_1 = arith.constant 0 : index
    %c0_2 = arith.constant 0 : index
    %1 = vector.load %arg2[%c0_1, %c0_2] : memref<512x128xf32, #tpu.memory_space<vmem>>, vector<512x128xf32>
    %cst = arith.constant dense<0.000000e+00> : vector<16x128xf32>
    %2 = tpu.matmul %0, %1, %cst {dimension_numbers = #tpu.dot_dimension_numbers<[1], [0], [0], [1], [0, 0, 1, 1], [], []>} : vector<16x512xf32>, vector<512x128xf32>, vector<16x128xf32> -> vector<16x128xf32>
    %c0_3 = arith.constant 0 : index
    %c0_4 = arith.constant 0 : index
    %3 = vector.load %arg5[%c0_3, %c0_4] : memref<4x128xf32, #tpu.memory_space<vmem>>, vector<1x128xf32>
    %4 = vector.broadcast %3 : vector<1x128xf32> to vector<16x128xf32>
    %5 = arith.mulf %2, %4 : vector<16x128xf32>
    %c1 = arith.constant 1 : index
    %c0_5 = arith.constant 0 : index
    %6 = vector.load %arg5[%c1, %c0_5] : memref<4x128xf32, #tpu.memory_space<vmem>>, vector<1x128xf32>
    %7 = vector.broadcast %6 : vector<1x128xf32> to vector<16x128xf32>
    %8 = arith.addf %5, %7 : vector<16x128xf32>
    %cst_6 = arith.constant 0.000000e+00 : f32
    %9 = vector.broadcast %cst_6 : f32 to vector<16x128xf32>
    %10 = arith.cmpf oge, %8, %9 : vector<16x128xf32>
    %cst_7 = arith.constant 5.000000e-02 : f32
    %11 = vector.broadcast %cst_7 : f32 to vector<16x128xf32>
    %12 = arith.mulf %11, %8 : vector<16x128xf32>
    %13 = arith.select %10, %8, %12 : vector<16x128xi1>, vector<16x128xf32>
    %cst_8 = arith.constant 0.000000e+00 : f32
    %14 = vector.broadcast %cst_8 : f32 to vector<1x2x128xf32>
    %c0_9 = arith.constant 0 : index
    %c0_10 = arith.constant 0 : index
    %c0_11 = arith.constant 0 : index
    %15 = vector.load %arg8[%c0_9, %c0_10, %c0_11] : memref<1x20x128xf32, #tpu.memory_space<vmem>>, vector<1x2x128xf32>
    tpu.vector_store %arg8[%c0_9, %c0_10, %c0_11], %14 {strides = array<i32>} : memref<1x20x128xf32, #tpu.memory_space<vmem>>, vector<1x2x128xf32>,
    %cst_12 = arith.constant 0.000000e+00 : f32
    %16 = vector.broadcast %cst_12 : f32 to vector<1x2x128xf32>
    %c0_13 = arith.constant 0 : index
    %c18 = arith.constant 18 : index
    %c0_14 = arith.constant 0 : index
    %17 = vector.load %arg8[%c0_13, %c18, %c0_14] : memref<1x20x128xf32, #tpu.memory_space<vmem>>, vector<1x2x128xf32>
    tpu.vector_store %arg8[%c0_13, %c18, %c0_14], %16 {strides = array<i32>} : memref<1x20x128xf32, #tpu.memory_space<vmem>>, vector<1x2x128xf32>,
    %18 = vector.shape_cast %13 : vector<16x128xf32> to vector<1x16x128xf32>
    %c0_15 = arith.constant 0 : index
    %c2 = arith.constant 2 : index
    %c0_16 = arith.constant 0 : index
    %19 = vector.load %arg8[%c0_15, %c2, %c0_16] : memref<1x20x128xf32, #tpu.memory_space<vmem>>, vector<1x16x128xf32>
    tpu.vector_store %arg8[%c0_15, %c2, %c0_16], %18 {strides = array<i32>} : memref<1x20x128xf32, #tpu.memory_space<vmem>>, vector<1x16x128xf32>,
    %cst_17 = arith.constant 0.000000e+00 : f32
    %20 = vector.broadcast %cst_17 : f32 to vector<16x128xf32>
    %c0_18 = arith.constant 0 : index
    %c0_19 = arith.constant 0 : index
    %c0_20 = arith.constant 0 : index
    %21 = vector.load %arg8[%c0_18, %c0_19, %c0_20] : memref<1x20x128xf32, #tpu.memory_space<vmem>>, vector<1x16x128xf32>
    %22 = vector.shape_cast %21 : vector<1x16x128xf32> to vector<16x128xf32>
    %c0_21 = arith.constant 0 : index
    %c0_22 = arith.constant 0 : index
    %23 = vector.load %arg3[%c0_21, %c0_22] : memref<384x128xf32, #tpu.memory_space<vmem>>, vector<128x128xf32>
    %cst_23 = arith.constant dense<0.000000e+00> : vector<16x128xf32>
    %24 = tpu.matmul %22, %23, %cst_23 {dimension_numbers = #tpu.dot_dimension_numbers<[1], [0], [0], [1], [0, 0, 1, 1], [], []>} : vector<16x128xf32>, vector<128x128xf32>, vector<16x128xf32> -> vector<16x128xf32>
    %25 = arith.addf %20, %24 : vector<16x128xf32>
    %c0_24 = arith.constant 0 : index
    %c2_25 = arith.constant 2 : index
    %c0_26 = arith.constant 0 : index
    %26 = vector.load %arg8[%c0_24, %c2_25, %c0_26] : memref<1x20x128xf32, #tpu.memory_space<vmem>>, vector<1x16x128xf32>
    %27 = vector.shape_cast %26 : vector<1x16x128xf32> to vector<16x128xf32>
    %c128 = arith.constant 128 : index
    %c0_27 = arith.constant 0 : index
    %28 = vector.load %arg3[%c128, %c0_27] : memref<384x128xf32, #tpu.memory_space<vmem>>, vector<128x128xf32>
    %cst_28 = arith.constant dense<0.000000e+00> : vector<16x128xf32>
    %29 = tpu.matmul %27, %28, %cst_28 {dimension_numbers = #tpu.dot_dimension_numbers<[1], [0], [0], [1], [0, 0, 1, 1], [], []>} : vector<16x128xf32>, vector<128x128xf32>, vector<16x128xf32> -> vector<16x128xf32>
    %30 = arith.addf %25, %29 : vector<16x128xf32>
    %c0_29 = arith.constant 0 : index
    %c4 = arith.constant 4 : index
    %c0_30 = arith.constant 0 : index
    %31 = vector.load %arg8[%c0_29, %c4, %c0_30] : memref<1x20x128xf32, #tpu.memory_space<vmem>>, vector<1x16x128xf32>
    %32 = vector.shape_cast %31 : vector<1x16x128xf32> to vector<16x128xf32>
    %c256 = arith.constant 256 : index
    %c0_31 = arith.constant 0 : index
    %33 = vector.load %arg3[%c256, %c0_31] : memref<384x128xf32, #tpu.memory_space<vmem>>, vector<128x128xf32>
    %cst_32 = arith.constant dense<0.000000e+00> : vector<16x128xf32>
    %34 = tpu.matmul %32, %33, %cst_32 {dimension_numbers = #tpu.dot_dimension_numbers<[1], [0], [0], [1], [0, 0, 1, 1], [], []>} : vector<16x128xf32>, vector<128x128xf32>, vector<16x128xf32> -> vector<16x128xf32>
    %35 = arith.addf %30, %34 : vector<16x128xf32>
    %c2_33 = arith.constant 2 : index
    %c0_34 = arith.constant 0 : index
    %36 = vector.load %arg5[%c2_33, %c0_34] : memref<4x128xf32, #tpu.memory_space<vmem>>, vector<1x128xf32>
    %37 = vector.broadcast %36 : vector<1x128xf32> to vector<16x128xf32>
    %38 = arith.mulf %35, %37 : vector<16x128xf32>
    %c3 = arith.constant 3 : index
    %c0_35 = arith.constant 0 : index
    %39 = vector.load %arg5[%c3, %c0_35] : memref<4x128xf32, #tpu.memory_space<vmem>>, vector<1x128xf32>
    %40 = vector.broadcast %39 : vector<1x128xf32> to vector<16x128xf32>
    %41 = arith.addf %38, %40 : vector<16x128xf32>
    %cst_36 = arith.constant 0.000000e+00 : f32
    %42 = vector.broadcast %cst_36 : f32 to vector<16x128xf32>
    %43 = arith.cmpf oge, %41, %42 : vector<16x128xf32>
    %cst_37 = arith.constant 5.000000e-02 : f32
    %44 = vector.broadcast %cst_37 : f32 to vector<16x128xf32>
    %45 = arith.mulf %44, %41 : vector<16x128xf32>
    %46 = arith.select %43, %41, %45 : vector<16x128xi1>, vector<16x128xf32>
    %c0_38 = arith.constant 0 : index
    %c0_39 = arith.constant 0 : index
    %47 = vector.load %arg4[%c0_38, %c0_39] : memref<128x512xf32, #tpu.memory_space<vmem>>, vector<128x512xf32>
    %cst_40 = arith.constant dense<0.000000e+00> : vector<16x512xf32>
    %48 = tpu.matmul %46, %47, %cst_40 {dimension_numbers = #tpu.dot_dimension_numbers<[1], [0], [0], [1], [0, 0, 1, 1], [], []>} : vector<16x128xf32>, vector<128x512xf32>, vector<16x512xf32> -> vector<16x512xf32>
    %c0_41 = arith.constant 0 : index
    %c0_42 = arith.constant 0 : index
    %49 = vector.load %arg6[%c0_41, %c0_42] : memref<1x512xf32, #tpu.memory_space<vmem>>, vector<1x512xf32>
    %50 = vector.broadcast %49 : vector<1x512xf32> to vector<16x512xf32>
    %51 = arith.addf %48, %50 : vector<16x512xf32>
    %c0_43 = arith.constant 0 : index
    %c0_44 = arith.constant 0 : index
    %52 = vector.load %arg7[%c0_43, %c0_44] : memref<16x512xf32, #tpu.memory_space<vmem>>, vector<16x512xf32>
    tpu.vector_store %arg7[%c0_43, %c0_44], %51 {strides = array<i32>} : memref<16x512xf32, #tpu.memory_space<vmem>>, vector<16x512xf32>,
    return
  }
  func.func @transform_0(%arg0: i32) -> (i32, i32) {
    %c0_i32 = arith.constant 0 : i32
    %c0_i32_0 = arith.constant 0 : i32
    return %arg0, %c0_i32 : i32, i32
  }
  func.func @transform_1(%arg0: i32) -> (i32, i32) {
    %c0_i32 = arith.constant 0 : i32
    %c0_i32_0 = arith.constant 0 : i32
    %c0_i32_1 = arith.constant 0 : i32
    return %c0_i32, %c0_i32_0 : i32, i32
  }
  func.func @transform_2(%arg0: i32) -> (i32, i32) {
    %c0_i32 = arith.constant 0 : i32
    %c0_i32_0 = arith.constant 0 : i32
    %c0_i32_1 = arith.constant 0 : i32
    return %c0_i32, %c0_i32_0 : i32, i32
  }
  func.func @transform_3(%arg0: i32) -> (i32, i32) {
    %c0_i32 = arith.constant 0 : i32
    %c0_i32_0 = arith.constant 0 : i32
    %c0_i32_1 = arith.constant 0 : i32
    return %c0_i32, %c0_i32_0 : i32, i32
  }
  func.func @transform_4(%arg0: i32) -> (i32, i32) {
    %c0_i32 = arith.constant 0 : i32
    %c0_i32_0 = arith.constant 0 : i32
    %c0_i32_1 = arith.constant 0 : i32
    return %c0_i32, %c0_i32_0 : i32, i32
  }
  func.func @transform_5(%arg0: i32) -> (i32, i32) {
    %c0_i32 = arith.constant 0 : i32
    %c0_i32_0 = arith.constant 0 : i32
    %c0_i32_1 = arith.constant 0 : i32
    return %c0_i32, %c0_i32_0 : i32, i32
  }
  func.func @transform_6(%arg0: i32) -> (i32, i32) {
    %c0_i32 = arith.constant 0 : i32
    %c0_i32_0 = arith.constant 0 : i32
    return %arg0, %c0_i32 : i32, i32
  }
}

</mosaic_0001>

<llo_original>
// kernel: tpu_custom_call.1
$region0: #{tpu_custom_call.1}
  #allocation0 [shape = 'u32[]', space=smem, size = 0x4, offset = 0x4, fixed_abs, tag = 'smem constant byte address 0x4 - core index']
  #allocation1 [shape = 'u32[144,128]{1,0:T(1,128)}', space=vmem, size = 0x12000, scoped, tag = 'internal scratch']
  #allocation2 [shape = 'f32[1,20,128]{2,1,0:T(8,128)}', space=vmem, size = 0x3000, scoped, tag = 'scratch operand']
  %s0 = inlined_call_operand.hbm [shape: f32[32,512], index: 0, kind: input, shape index: {}]
  %s1 = inlined_call_operand.hbm [shape: f32[512,128], index: 1, kind: input, shape index: {}]
  %s2 = inlined_call_operand.hbm [shape: f32[384,128], index: 2, kind: input, shape index: {}]
  %s3 = inlined_call_operand.hbm [shape: f32[128,512], index: 3, kind: input, shape index: {}]
  %s4 = inlined_call_operand.vmem [shape: f32[4,128], index: 4, kind: input, shape index: {}]
  %s5 = inlined_call_operand.vmem [shape: f32[1,512], index: 5, kind: input, shape index: {}]
  %s6 = inlined_call_operand.hbm [shape: f32[32,512], index: 6, kind: output, shape index: {}]
  %s7 = sld [smem:[#allocation0]]
  $region73: #{tpu_custom_call.1} parent=0
    _
  %s9 = ssub.s32 1, %s7
  %s10 = scalar_select 0, %s9, %s7
  $region1: #{tpu_custom_call.1} parent=0
    #allocation3 [shape = 'u8[65536]{0}', space=vmem, size = 0x10000, scoped, tag = 'input window, operand 0']
    #allocation4 [shape = 's32[2]{0}', space=sflag, size = 0x8, scoped, tag = 'scoped memory for tpu_custom_call.1']
    #allocation5 [shape = 's32[2]{0}', space=sflag, size = 0x8, scoped, tag = 'scoped memory for tpu_custom_call.1']
    #allocation6 [shape = 'u8[262144]{0}', space=vmem, size = 0x40000, scoped, tag = 'input window, operand 1, single buffered']
    #allocation7 [shape = 's32[1]{0}', space=sflag, size = 0x4, scoped, tag = 'scoped memory for tpu_custom_call.1']
    #allocation8 [shape = 'u8[196608]{0}', space=vmem, size = 0x30000, scoped, tag = 'input window, operand 2, single buffered']
    #allocation9 [shape = 'u8[262144]{0}', space=vmem, size = 0x40000, scoped, tag = 'input window, operand 3, single buffered']
    #allocation10 [shape = 's32[1]{0}', space=sflag, size = 0x4, scoped, tag = 'scoped memory for tpu_custom_call.1']
    #allocation11 [shape = 'u8[65536]{0}', space=vmem, size = 0x10000, scoped, tag = 'output window, operand 0']
    %11 = vsyncpa [#allocation4], 0
    %s12 = scalar_lea.sflag [#allocation4], 1
    %13 = vsyncpa %s12, 0
    %14 = vsyncpa [#allocation7], 0
    %15 = vsyncpa [#allocation10], 0
    %16 = vsyncpa [#allocation5], 0
    %s17 = scalar_lea.sflag [#allocation5], 1
    %18 = vsyncpa %s17, 0
    loop: start=0, step=1, limit=4
    $region2: #{tpu_custom_call.1} parent=1 // loop_pre_header
      _
    $region3: #{tpu_custom_call.1} parent=1 // loop_header
      %s20 = sphi 0, %s24
      %p21 = scmp.ge.s32.totalorder %s20, 4
      %s30 = sphi 0, %s32
      %s33 = sphi 0, %s30
      %s34 = sphi 0, %s33
      %s50 = sphi 0, %s34
      %s54 = sphi 0, %s54
      %s56 = sphi 0, %s54
      %s57 = sphi 0, %s56
      %s71 = sphi 0, %s57
      %s75 = sphi 0, %s75
      %s77 = sphi 0, %s75
      %s78 = sphi 0, %s77
      %s92 = sphi 0, %s78
      %s96 = sphi 0, %s96
      %s98 = sphi 0, %s96
      %s99 = sphi 0, %s98
      %s113 = sphi 0, %s99
      %s117 = sphi 0, %s117
      %s119 = sphi 0, %s117
      %s120 = sphi 0, %s119
      %s134 = sphi 0, %s120
      %s138 = sphi 0, %s138
      %s140 = sphi 0, %s138
      %s141 = sphi 0, %s140
      %s155 = sphi 0, %s141
      %s161 = sphi 0, %s163
      %s164 = sphi 0, %s161
      %s165 = sphi 0, %s164
      %s181 = sphi 0, %s165
    $region4: #{tpu_custom_call.1} parent=1 // loop_header_branch
      %23 = sbr.rel (%p21) target = $region8
    $region5: #{tpu_custom_call.1} parent=1 // loop_body
      %s25 = ssub.s32 %s20, 1
      %s26 = ssub.s32 %s20, 2
      %s27 = sadd.s32 %s20, 1
      %s28 = ssub.s32 %s20, %s27
      %p29 = scmp.eq.s32.totalorder %s28, 0
      %s31 = sadd.s32 %s30, 1
      %s32 = scalar_select %p29, %s30, %s31
      %p35 = pneg %p29
      %p36 = scmp.eq.s32.totalorder %s20, 1
      %p37 = por %p35, %p36
      %p38 = scmp.ne.s32.totalorder %s30, %s33
      %p39 = scmp.eq.s32.totalorder %s20, 0
      %p40 = por %p38, %p39
      %p41 = scmp.ne.s32.totalorder %s30, %s33
      %p42 = scmp.eq.s32.totalorder %s25, 1
      %p43 = por %p41, %p42
      %p44 = scmp.ne.s32.totalorder %s33, %s34
      %p45 = scmp.eq.s32.totalorder %s25, 0
      %p46 = por %p44, %p45
      %p47 = scmp.ne.s32.totalorder %s33, %s34
      %p48 = scmp.eq.s32.totalorder %s26, 1
      %p49 = por %p47, %p48
      %p51 = scmp.ne.s32.totalorder %s34, %s50
      %p52 = scmp.eq.s32.totalorder %s26, 0
      %p53 = por %p51, %p52
      %s55 = sadd.s32 %s54, 1
      %p58 = scmp.eq.s32.totalorder %s20, 1
      %p59 = scmp.ne.s32.totalorder %s54, %s56
      %p60 = scmp.eq.s32.totalorder %s20, 0
      %p61 = por %p59, %p60
      %p62 = scmp.ne.s32.totalorder %s54, %s56
      %p63 = scmp.eq.s32.totalorder %s25, 1
      %p64 = por %p62, %p63
      %p65 = scmp.ne.s32.totalorder %s56, %s57
      %p66 = scmp.eq.s32.totalorder %s25, 0
      %p67 = por %p65, %p66
      %p68 = scmp.ne.s32.totalorder %s56, %s57
      %p69 = scmp.eq.s32.totalorder %s26, 1
      %p70 = por %p68, %p69
      %p72 = scmp.ne.s32.totalorder %s57, %s71
      %p73 = scmp.eq.s32.totalorder %s26, 0
      %p74 = por %p72, %p73
      %s76 = sadd.s32 %s75, 1
      %p79 = scmp.eq.s32.totalorder %s20, 1
      %p80 = scmp.ne.s32.totalorder %s75, %s77
      %p81 = scmp.eq.s32.totalorder %s20, 0
      %p82 = por %p80, %p81
      %p83 = scmp.ne.s32.totalorder %s75, %s77
      %p84 = scmp.eq.s32.totalorder %s25, 1
      %p85 = por %p83, %p84
      %p86 = scmp.ne.s32.totalorder %s77, %s78
      %p87 = scmp.eq.s32.totalorder %s25, 0
      %p88 = por %p86, %p87
      %p89 = scmp.ne.s32.totalorder %s77, %s78
      %p90 = scmp.eq.s32.totalorder %s26, 1
      %p91 = por %p89, %p90
      %p93 = scmp.ne.s32.totalorder %s78, %s92
      %p94 = scmp.eq.s32.totalorder %s26, 0
      %p95 = por %p93, %p94
      %s97 = sadd.s32 %s96, 1
      %p100 = scmp.eq.s32.totalorder %s20, 1
      %p101 = scmp.ne.s32.totalorder %s96, %s98
      %p102 = scmp.eq.s32.totalorder %s20, 0
      %p103 = por %p101, %p102
      %p104 = scmp.ne.s32.totalorder %s96, %s98
      %p105 = scmp.eq.s32.totalorder %s25, 1
      %p106 = por %p104, %p105
      %p107 = scmp.ne.s32.totalorder %s98, %s99
      %p108 = scmp.eq.s32.totalorder %s25, 0
      %p109 = por %p107, %p108
      %p110 = scmp.ne.s32.totalorder %s98, %s99
      %p111 = scmp.eq.s32.totalorder %s26, 1
      %p112 = por %p110, %p111
      %p114 = scmp.ne.s32.totalorder %s99, %s113
      %p115 = scmp.eq.s32.totalorder %s26, 0
      %p116 = por %p114, %p115
      %s118 = sadd.s32 %s117, 1
      %p121 = scmp.eq.s32.totalorder %s20, 1
      %p122 = scmp.ne.s32.totalorder %s117, %s119
      %p123 = scmp.eq.s32.totalorder %s20, 0
      %p124 = por %p122, %p123
      %p125 = scmp.ne.s32.totalorder %s117, %s119
      %p126 = scmp.eq.s32.totalorder %s25, 1
      %p127 = por %p125, %p126
      %p128 = scmp.ne.s32.totalorder %s119, %s120
      %p129 = scmp.eq.s32.totalorder %s25, 0
      %p130 = por %p128, %p129
      %p131 = scmp.ne.s32.totalorder %s119, %s120
      %p132 = scmp.eq.s32.totalorder %s26, 1
      %p133 = por %p131, %p132
      %p135 = scmp.ne.s32.totalorder %s120, %s134
      %p136 = scmp.eq.s32.totalorder %s26, 0
      %p137 = por %p135, %p136
      %s139 = sadd.s32 %s138, 1
      %p142 = scmp.eq.s32.totalorder %s20, 1
      %p143 = scmp.ne.s32.totalorder %s138, %s140
      %p144 = scmp.eq.s32.totalorder %s20, 0
      %p145 = por %p143, %p144
      %p146 = scmp.ne.s32.totalorder %s138, %s140
      %p147 = scmp.eq.s32.totalorder %s25, 1
      %p148 = por %p146, %p147
      %p149 = scmp.ne.s32.totalorder %s140, %s141
      %p150 = scmp.eq.s32.totalorder %s25, 0
      %p151 = por %p149, %p150
      %p152 = scmp.ne.s32.totalorder %s140, %s141
      %p153 = scmp.eq.s32.totalorder %s26, 1
      %p154 = por %p152, %p153
      %p156 = scmp.ne.s32.totalorder %s141, %s155
      %p157 = scmp.eq.s32.totalorder %s26, 0
      %p158 = por %p156, %p157
      %s159 = ssub.s32 %s20, %s27
      %p160 = scmp.eq.s32.totalorder %s159, 0
      %s162 = sadd.s32 %s161, 1
      %s163 = scalar_select %p160, %s161, %s162
      %p166 = pneg %p160
      %p167 = scmp.eq.s32.totalorder %s20, 1
      %p168 = por %p166, %p167
      %p169 = scmp.ne.s32.totalorder %s161, %s164
      %p170 = scmp.eq.s32.totalorder %s20, 0
      %p171 = por %p169, %p170
      %p172 = scmp.ne.s32.totalorder %s161, %s164
      %p173 = scmp.eq.s32.totalorder %s25, 1
      %p174 = por %p172, %p173
      %p175 = scmp.ne.s32.totalorder %s164, %s165
      %p176 = scmp.eq.s32.totalorder %s25, 0
      %p177 = por %p175, %p176
      %p178 = scmp.ne.s32.totalorder %s164, %s165
      %p179 = scmp.eq.s32.totalorder %s26, 1
      %p180 = por %p178, %p179
      %p182 = scmp.ne.s32.totalorder %s165, %s181
      %p183 = scmp.eq.s32.totalorder %s26, 0
      %p184 = por %p182, %p183
      %p185 = scmp.le.s32.totalorder 1, %s20
      %p186 = scmp.lt.s32.totalorder %s20, 3
      %p187 = pnand %p185, %p186
      %p188 = pneg %p187
      // Predicated region
      $region9: #{tpu_custom_call.1} parent=5 // pred_check
        _
      $region10: #{tpu_custom_call.1} parent=5 // pred_check_branch
        %190 = sbr.rel (%p187) target = $region12
      $region11: #{tpu_custom_call.1} parent=5 // pred_region
        %s191 = ssub.s32 %s20, 1
        // Predicated region
        $region13: #{tpu_custom_call.1} parent=11 // pred_check
          %p192 = pneg %p67
        $region14: #{tpu_custom_call.1} parent=11 // pred_check_branch
          %194 = sbr.rel (%p192) target = $region16
        $region15: #{tpu_custom_call.1} parent=11 // pred_region
          %s196 = ssub.s32 8192, 8192
          %197 = vsyncadd [#allocation7], %s196
          %s198 = sshll.u32 [#allocation6], 4
          %s199 = int_to_ptr.vmem [resolvable:$true] %s198
          %204 = dma.hbm_to_vmem [thread:$0]  %s1, 8192, %s199, [#allocation7], 128, 128, 8
        $region16: #{tpu_custom_call.1} parent=11 // pred_fallthru
          _
        // Predicated region
        $region17: #{tpu_custom_call.1} parent=11 // pred_check
          %p205 = pneg %p88
        $region18: #{tpu_custom_call.1} parent=11 // pred_check_branch
          %207 = sbr.rel (%p205) target = $region20
        $region19: #{tpu_custom_call.1} parent=11 // pred_region
          %s209 = ssub.s32 6144, 6144
          %210 = vsyncadd [#allocation7], %s209
          %s211 = sshll.u32 [#allocation8], 4
          %s212 = int_to_ptr.vmem [resolvable:$true] %s211
          %217 = dma.hbm_to_vmem [thread:$0]  %s2, 6144, %s212, [#allocation7], 128, 128, 8
        $region20: #{tpu_custom_call.1} parent=11 // pred_fallthru
          _
        // Predicated region
        $region21: #{tpu_custom_call.1} parent=11 // pred_check
          %p218 = pneg %p109
        $region22: #{tpu_custom_call.1} parent=11 // pred_check_branch
          %220 = sbr.rel (%p218) target = $region24
        $region23: #{tpu_custom_call.1} parent=11 // pred_region
          %s222 = ssub.s32 8192, 8192
          %223 = vsyncadd [#allocation10], %s222
          %s224 = sshll.u32 [#allocation9], 4
          %s225 = int_to_ptr.vmem [resolvable:$true] %s224
          %230 = dma.hbm_to_vmem [thread:$0]  %s3, 8192, %s225, [#allocation10], 512, 512, 32
        $region24: #{tpu_custom_call.1} parent=11 // pred_fallthru
          _
        // Predicated region
        $region25: #{tpu_custom_call.1} parent=11 // pred_check
          %p231 = pneg %p130
        $region26: #{tpu_custom_call.1} parent=11 // pred_check_branch
          %233 = sbr.rel (%p231) target = $region28
        $region27: #{tpu_custom_call.1} parent=11 // pred_region
          _
        $region28: #{tpu_custom_call.1} parent=11 // pred_fallthru
          _
        // Predicated region
        $region29: #{tpu_custom_call.1} parent=11 // pred_check
          %p234 = pneg %p151
        $region30: #{tpu_custom_call.1} parent=11 // pred_check_branch
          %236 = sbr.rel (%p234) target = $region32
        $region31: #{tpu_custom_call.1} parent=11 // pred_region
          _
        $region32: #{tpu_custom_call.1} parent=11 // pred_fallthru
          _
      $region12: #{tpu_custom_call.1} parent=5 // pred_fallthru
        _
      %p237 = scmp.lt.s32.totalorder %s20, 2
      // Predicated region
      $region33: #{tpu_custom_call.1} parent=5 // pred_check
        %p238 = pneg %p237
      $region34: #{tpu_custom_call.1} parent=5 // pred_check_branch
        %240 = sbr.rel (%p238) target = $region36
      $region35: #{tpu_custom_call.1} parent=5 // pred_region
        // Predicated region
        $region37: #{tpu_custom_call.1} parent=35 // pred_check
          %p241 = pneg %p40
        $region38: #{tpu_custom_call.1} parent=35 // pred_check_branch
          %243 = sbr.rel (%p241) target = $region40
        $region39: #{tpu_custom_call.1} parent=35 // pred_region
          %s244 = sand.u32 %s30, 1
          %s245 = scalar_lea.sflag [#allocation4], %s244
          %s246 = sand.u32 %s30, 1
          %s247 = smul.addr %s246, 64
          %s248 = scalar_lea.vmem [#allocation3], %s247
          %s249 = smul.u32 2, %s20
          %s251 = ssub.s32 1024, 1024
          %252 = vsyncadd %s245, %s251
          %s253 = smul.addr %s249, 4
          %s254 = smul.addr %s253, 128
          %s255 = scalar_lea.hbm %s0, %s254
          %s256 = sshll.u32 %s248, 4
          %s257 = int_to_ptr.vmem [resolvable:$true] %s256
          %262 = dma.hbm_to_vmem [thread:$0]  %s255, 1024, %s257, %s245, 512, 512, 32
        $region40: #{tpu_custom_call.1} parent=35 // pred_fallthru
          _
      $region36: #{tpu_custom_call.1} parent=5 // pred_fallthru
        _
      %p263 = scmp.le.s32.totalorder 1, %s20
      %p264 = scmp.lt.s32.totalorder %s20, 3
      %p265 = pnand %p263, %p264
      %p266 = pneg %p265
      // Predicated region
      $region41: #{tpu_custom_call.1} parent=5 // pred_check
        _
      $region42: #{tpu_custom_call.1} parent=5 // pred_check_branch
        %268 = sbr.rel (%p265) target = $region44
      $region43: #{tpu_custom_call.1} parent=5 // pred_region
        %s269 = ssub.s32 %s20, 1
        %s270 = sand.u32 %s33, 1
        %s271 = scalar_lea.sflag [#allocation4], %s270
        %s272 = sand.u32 %s33, 1
        %s273 = smul.addr %s272, 64
        %s274 = scalar_lea.vmem [#allocation3], %s273
        // Predicated region
        $region45: #{tpu_custom_call.1} parent=43 // pred_check
          %p275 = pneg %p46
        $region46: #{tpu_custom_call.1} parent=43 // pred_check_branch
          %277 = sbr.rel (%p275) target = $region48
        $region47: #{tpu_custom_call.1} parent=43 // pred_region
          %278 = dma.done %s271, 1024
        $region48: #{tpu_custom_call.1} parent=43 // pred_fallthru
          _
        // Predicated region
        $region49: #{tpu_custom_call.1} parent=43 // pred_check
          %p279 = pneg %p67
        $region50: #{tpu_custom_call.1} parent=43 // pred_check_branch
          %281 = sbr.rel (%p279) target = $region52
        $region51: #{tpu_custom_call.1} parent=43 // pred_region
          %282 = dma.done [#allocation7], 8192
        $region52: #{tpu_custom_call.1} parent=43 // pred_fallthru
          _
        // Predicated region
        $region53: #{tpu_custom_call.1} parent=43 // pred_check
          %p283 = pneg %p88
        $region54: #{tpu_custom_call.1} parent=43 // pred_check_branch
          %285 = sbr.rel (%p283) target = $region56
        $region55: #{tpu_custom_call.1} parent=43 // pred_region
          %286 = dma.done [#allocation7], 6144
        $region56: #{tpu_custom_call.1} parent=43 // pred_fallthru
          _
        // Predicated region
        $region57: #{tpu_custom_call.1} parent=43 // pred_check
          %p287 = pneg %p109
        $region58: #{tpu_custom_call.1} parent=43 // pred_check_branch
          %289 = sbr.rel (%p287) target = $region60
        $region59: #{tpu_custom_call.1} parent=43 // pred_region
          %290 = dma.done [#allocation10], 8192
        $region60: #{tpu_custom_call.1} parent=43 // pred_fallthru
          _
        %s291 = sand.u32 %s33, 1
        %s292 = scalar_lea.sflag [#allocation4], %s291
        %s293 = sand.u32 %s33, 1
        %s294 = smul.addr %s293, 64
        %s295 = scalar_lea.vmem [#allocation3], %s294
        %p296 = pneg %p46
        %p297 = pneg %p43
        %p298 = pneg %p67
        %p299 = pneg %p64
        %p300 = pneg %p88
        %p301 = pneg %p85
        %p302 = pneg %p109
        %p303 = pneg %p106
        %p304 = pneg %p130
        %p305 = pneg %p127
        %p306 = pneg %p151
        %p307 = pneg %p148
        %p308 = pneg %p177
        %p309 = pneg %p174
        %s310 = sand.u32 %s164, 1
        %s311 = scalar_lea.sflag [#allocation5], %s310
        %s312 = sand.u32 %s164, 1
        %s313 = smul.addr %s312, 64
        %s314 = scalar_lea.vmem [#allocation11], %s313
        %s315 = smul.u32 2, %s25
        %s316 = smul.u32 2, %s25
        %v317 = vld [vmem:[%s274] sm:$0xff]
        %v318 = vld [vmem:[%s274 + $0x8] sm:$0xff]
        %v319 = vld [vmem:[%s274 + $0x10] sm:$0xff]
        %v320 = vld [vmem:[%s274 + $0x18] sm:$0xff]
        %v321 = vld [vmem:[%s274 + $0x20] sm:$0xff]
        %v322 = vld [vmem:[%s274 + $0x28] sm:$0xff]
        %v323 = vld [vmem:[%s274 + $0x30] sm:$0xff]
        %v324 = vld [vmem:[%s274 + $0x38] sm:$0xff]
        %v325 = vld [vmem:[#allocation6] sm:$0xff]
        %v326 = vld [vmem:[#allocation6 + $0x8] sm:$0xff]
        %v327 = vld [vmem:[#allocation6 + $0x10] sm:$0xff]
        %v328 = vld [vmem:[#allocation6 + $0x18] sm:$0xff]
        %v329 = vld [vmem:[#allocation6 + $0x20] sm:$0xff]
        %v330 = vld [vmem:[#allocation6 + $0x28] sm:$0xff]
        %v331 = vld [vmem:[#allocation6 + $0x30] sm:$0xff]
        %v332 = vld [vmem:[#allocation6 + $0x38] sm:$0xff]
        %v333 = vld [vmem:[#allocation6 + $0x40] sm:$0xff]
        %v334 = vld [vmem:[#allocation6 + $0x48] sm:$0xff]
        %v335 = vld [vmem:[#allocation6 + $0x50] sm:$0xff]
        %v336 = vld [vmem:[#allocation6 + $0x58] sm:$0xff]
        %v337 = vld [vmem:[#allocation6 + $0x60] sm:$0xff]
        %v338 = vld [vmem:[#allocation6 + $0x68] sm:$0xff]
        %v339 = vld [vmem:[#allocation6 + $0x70] sm:$0xff]
        %v340 = vld [vmem:[#allocation6 + $0x78] sm:$0xff]
        %v341 = vld [vmem:[#allocation6 + $0x80] sm:$0xff]
        %v342 = vld [vmem:[#allocation6 + $0x88] sm:$0xff]
        %v343 = vld [vmem:[#allocation6 + $0x90] sm:$0xff]
        %v344 = vld [vmem:[#allocation6 + $0x98] sm:$0xff]
        %v345 = vld [vmem:[#allocation6 + $0xa0] sm:$0xff]
        %v346 = vld [vmem:[#allocation6 + $0xa8] sm:$0xff]
        %v347 = vld [vmem:[#allocation6 + $0xb0] sm:$0xff]
        %v348 = vld [vmem:[#allocation6 + $0xb8] sm:$0xff]
        %v349 = vld [vmem:[#allocation6 + $0xc0] sm:$0xff]
        %v350 = vld [vmem:[#allocation6 + $0xc8] sm:$0xff]
        %v351 = vld [vmem:[#allocation6 + $0xd0] sm:$0xff]
        %v352 = vld [vmem:[#allocation6 + $0xd8] sm:$0xff]
        %v353 = vld [vmem:[#allocation6 + $0xe0] sm:$0xff]
        %v354 = vld [vmem:[#allocation6 + $0xe8] sm:$0xff]
        %v355 = vld [vmem:[#allocation6 + $0xf0] sm:$0xff]
        %v356 = vld [vmem:[#allocation6 + $0xf8] sm:$0xff]
        %v357 = vld [vmem:[#allocation6 + $0x100] sm:$0xff]
        %v358 = vld [vmem:[#allocation6 + $0x108] sm:$0xff]
        %v359 = vld [vmem:[#allocation6 + $0x110] sm:$0xff]
        %v360 = vld [vmem:[#allocation6 + $0x118] sm:$0xff]
        %v361 = vld [vmem:[#allocation6 + $0x120] sm:$0xff]
        %v362 = vld [vmem:[#allocation6 + $0x128] sm:$0xff]
        %v363 = vld [vmem:[#allocation6 + $0x130] sm:$0xff]
        %v364 = vld [vmem:[#allocation6 + $0x138] sm:$0xff]
        %v365 = vld [vmem:[#allocation6 + $0x140] sm:$0xff]
        %v366 = vld [vmem:[#allocation6 + $0x148] sm:$0xff]
        %v367 = vld [vmem:[#allocation6 + $0x150] sm:$0xff]
        %v368 = vld [vmem:[#allocation6 + $0x158] sm:$0xff]
        %v369 = vld [vmem:[#allocation6 + $0x160] sm:$0xff]
        %v370 = vld [vmem:[#allocation6 + $0x168] sm:$0xff]
        %v371 = vld [vmem:[#allocation6 + $0x170] sm:$0xff]
        %v372 = vld [vmem:[#allocation6 + $0x178] sm:$0xff]
        %v373 = vld [vmem:[#allocation6 + $0x180] sm:$0xff]
        %v374 = vld [vmem:[#allocation6 + $0x188] sm:$0xff]
        %v375 = vld [vmem:[#allocation6 + $0x190] sm:$0xff]
        %v376 = vld [vmem:[#allocation6 + $0x198] sm:$0xff]
        %v377 = vld [vmem:[#allocation6 + $0x1a0] sm:$0xff]
        %v378 = vld [vmem:[#allocation6 + $0x1a8] sm:$0xff]
        %v379 = vld [vmem:[#allocation6 + $0x1b0] sm:$0xff]
        %v380 = vld [vmem:[#allocation6 + $0x1b8] sm:$0xff]
        %v381 = vld [vmem:[#allocation6 + $0x1c0] sm:$0xff]
        %v382 = vld [vmem:[#allocation6 + $0x1c8] sm:$0xff]
        %v383 = vld [vmem:[#allocation6 + $0x1d0] sm:$0xff]
        %v384 = vld [vmem:[#allocation6 + $0x1d8] sm:$0xff]
        %v385 = vld [vmem:[#allocation6 + $0x1e0] sm:$0xff]
        %v386 = vld [vmem:[#allocation6 + $0x1e8] sm:$0xff]
        %v387 = vld [vmem:[#allocation6 + $0x1f0] sm:$0xff]
        %v388 = vld [vmem:[#allocation6 + $0x1f8] sm:$0xff]
        %389 = vmatprep.subr.mxu0 0.0
        %390 = vmatpush1.msra.mxu0 %v340
        %391 = vmatprep.subr.mxu0 0.0
        %392 = vmatpush1.msra.mxu0 %v339
        %393 = vmatprep.subr.mxu0 0.0
        %394 = vmatpush1.msra.mxu0 %v338
        %395 = vmatprep.subr.mxu0 0.0
        %396 = vmatpush1.msra.mxu0 %v337
        %397 = vmatprep.subr.mxu0 0.0
        %398 = vmatpush1.msra.mxu0 %v336
        %399 = vmatprep.subr.mxu0 0.0
        %400 = vmatpush1.msra.mxu0 %v335
        %401 = vmatprep.subr.mxu0 0.0
        %402 = vmatpush1.msra.mxu0 %v334
        %403 = vmatprep.subr.mxu0 0.0
        %404 = vmatpush1.msra.mxu0 %v333
        %405 = vmatprep.subr.mxu0 0.0
        %406 = vmatpush1.msra.mxu0 %v332
        %407 = vmatprep.subr.mxu0 0.0
        %408 = vmatpush1.msra.mxu0 %v331
        %409 = vmatprep.subr.mxu0 0.0
        %410 = vmatpush1.msra.mxu0 %v330
        %411 = vmatprep.subr.mxu0 0.0
        %412 = vmatpush1.msra.mxu0 %v329
        %413 = vmatprep.subr.mxu0 0.0
        %414 = vmatpush1.msra.mxu0 %v328
        %415 = vmatprep.subr.mxu0 0.0
        %416 = vmatpush1.msra.mxu0 %v327
        %417 = vmatprep.subr.mxu0 0.0
        %418 = vmatpush1.msra.mxu0 %v326
        %419 = vmatprep.subr.mxu0 0.0
        %420 = vmatpush1.msra.mxu0 %v325
        %421 = vmatprep.subr.mxu0 0.0
        %422 = vmatpush2.msra.mxu0 %v356
        %423 = vmatprep.subr.mxu0 0.0
        %424 = vmatpush2.msra.mxu0 %v355
        %425 = vmatprep.subr.mxu0 0.0
        %426 = vmatpush2.msra.mxu0 %v354
        %427 = vmatprep.subr.mxu0 0.0
        %428 = vmatpush2.msra.mxu0 %v353
        %429 = vmatprep.subr.mxu0 0.0
        %430 = vmatpush2.msra.mxu0 %v352
        %431 = vmatprep.subr.mxu0 0.0
        %432 = vmatpush2.msra.mxu0 %v351
        %433 = vmatprep.subr.mxu0 0.0
        %434 = vmatpush2.msra.mxu0 %v350
        %435 = vmatprep.subr.mxu0 0.0
        %436 = vmatpush2.msra.mxu0 %v349
        %437 = vmatprep.subr.mxu0 0.0
        %438 = vmatpush2.msra.mxu0 %v348
        %439 = vmatprep.subr.mxu0 0.0
        %440 = vmatpush2.msra.mxu0 %v347
        %441 = vmatprep.subr.mxu0 0.0
        %442 = vmatpush2.msra.mxu0 %v346
        %443 = vmatprep.subr.mxu0 0.0
        %444 = vmatpush2.msra.mxu0 %v345
        %445 = vmatprep.subr.mxu0 0.0
        %446 = vmatpush2.msra.mxu0 %v344
        %447 = vmatprep.subr.mxu0 0.0
        %448 = vmatpush2.msra.mxu0 %v343
        %449 = vmatprep.subr.mxu0 0.0
        %450 = vmatpush2.msra.mxu0 %v342
        %451 = vmatprep.subr.mxu0 0.0
        %452 = vmatpush2.msra.mxu0 %v341
        %453 = vmatprep.mubr.f32.mxu0 %v318
        %454 = vmatmul.mubr.f32.gmra.mxu0 %v317
        %v455 = vpop.f32.mrf.mxu0
        %v456 = vadd.f32 0.0, %v455
        %v457 = vpop.f32.mrf.mxu0
        %458 = vmatprep.mubr.f32.mxu0 %v322
        %459 = vmatmul.mubr.f32.gmra.mxu0 %v321
        %v460 = vpop.f32.mrf.mxu0
        %v461 = vadd.f32 0.0, %v460
        %v462 = vpop.f32.mrf.mxu0
        %463 = vdwg.mxu0
        %464 = vmatprep.subr.mxu0 0.0
        %465 = vmatpush1.msra.mxu0 %v372
        %466 = vmatprep.subr.mxu0 0.0
        %467 = vmatpush1.msra.mxu0 %v371
        %468 = vmatprep.subr.mxu0 0.0
        %469 = vmatpush1.msra.mxu0 %v370
        %470 = vmatprep.subr.mxu0 0.0
        %471 = vmatpush1.msra.mxu0 %v369
        %472 = vmatprep.subr.mxu0 0.0
        %473 = vmatpush1.msra.mxu0 %v368
        %474 = vmatprep.subr.mxu0 0.0
        %475 = vmatpush1.msra.mxu0 %v367
        %476 = vmatprep.subr.mxu0 0.0
        %477 = vmatpush1.msra.mxu0 %v366
        %478 = vmatprep.subr.mxu0 0.0
        %479 = vmatpush1.msra.mxu0 %v365
        %480 = vmatprep.subr.mxu0 0.0
        %481 = vmatpush1.msra.mxu0 %v364
        %482 = vmatprep.subr.mxu0 0.0
        %483 = vmatpush1.msra.mxu0 %v363
        %484 = vmatprep.subr.mxu0 0.0
        %485 = vmatpush1.msra.mxu0 %v362
        %486 = vmatprep.subr.mxu0 0.0
        %487 = vmatpush1.msra.mxu0 %v361
        %488 = vmatprep.subr.mxu0 0.0
        %489 = vmatpush1.msra.mxu0 %v360
        %490 = vmatprep.subr.mxu0 0.0
        %491 = vmatpush1.msra.mxu0 %v359
        %492 = vmatprep.subr.mxu0 0.0
        %493 = vmatpush1.msra.mxu0 %v358
        %494 = vmatprep.subr.mxu0 0.0
        %495 = vmatpush1.msra.mxu0 %v357
        %496 = vmatprep.subr.mxu0 0.0
        %497 = vmatpush2.msra.mxu0 %v388
        %498 = vmatprep.subr.mxu0 0.0
        %499 = vmatpush2.msra.mxu0 %v387
        %500 = vmatprep.subr.mxu0 0.0
        %501 = vmatpush2.msra.mxu0 %v386
        %502 = vmatprep.subr.mxu0 0.0
        %503 = vmatpush2.msra.mxu0 %v385
        %504 = vmatprep.subr.mxu0 0.0
        %505 = vmatpush2.msra.mxu0 %v384
        %506 = vmatprep.subr.mxu0 0.0
        %507 = vmatpush2.msra.mxu0 %v383
        %508 = vmatprep.subr.mxu0 0.0
        %509 = vmatpush2.msra.mxu0 %v382
        %510 = vmatprep.subr.mxu0 0.0
        %511 = vmatpush2.msra.mxu0 %v381
        %512 = vmatprep.subr.mxu0 0.0
        %513 = vmatpush2.msra.mxu0 %v380
        %514 = vmatprep.subr.mxu0 0.0
        %515 = vmatpush2.msra.mxu0 %v379
        %516 = vmatprep.subr.mxu0 0.0
        %517 = vmatpush2.msra.mxu0 %v378
        %518 = vmatprep.subr.mxu0 0.0
        %519 = vmatpush2.msra.mxu0 %v377
        %520 = vmatprep.subr.mxu0 0.0
        %521 = vmatpush2.msra.mxu0 %v376
        %522 = vmatprep.subr.mxu0 0.0
        %523 = vmatpush2.msra.mxu0 %v375
        %524 = vmatprep.subr.mxu0 0.0
        %525 = vmatpush2.msra.mxu0 %v374
        %526 = vmatprep.subr.mxu0 0.0
        %527 = vmatpush2.msra.mxu0 %v373
        %528 = vmatprep.mubr.f32.mxu0 %v320
        %529 = vmatmul.mubr.f32.gmra.mxu0 %v319
        %v530 = vpop.f32.mrf.mxu0
        %v531 = vadd.f32 %v456, %v530
        %v532 = vpop.f32.mrf.mxu0
        %533 = vmatprep.mubr.f32.mxu0 %v324
        %534 = vmatmul.mubr.f32.gmra.mxu0 %v323
        %v535 = vpop.f32.mrf.mxu0
        %v536 = vadd.f32 %v461, %v535
        %v537 = vpop.f32.mrf.mxu0
        %538 = vdwg.mxu0
        %v539 = vld [vmem:[%s4] sm:$0x1]
        %v540 = vlaneseq
        %v541 = vshrl.u32 %v540, 7
        %v542 = vsub.s32 0, %v541
        %v543 = vrot.slane %v539, %v542
        %v544 = vmul.f32 %v531, %v543
        %v545 = vmul.f32 %v536, %v543
        %v546 = vld [vmem:[%s4 + $0x1] sm:$0x1]
        %v547 = vlaneseq
        %v548 = vshrl.u32 %v547, 7
        %v549 = vsub.s32 0, %v548
        %v550 = vrot.slane %v546, %v549
        %v551 = vadd.f32 %v544, %v550
        %v552 = vadd.f32 %v545, %v550
        %vm553 = vcmp.ge.f32.partialorder %v551, 0.0
        %vm554 = vcmp.ge.f32.partialorder %v552, 0.0
        %v555 = vmul.f32 %v551, 0.05
        %v556 = vmul.f32 %v552, 0.05
        %v557 = vsel %vm553, %v551, %v555
        %v558 = vsel %vm554, %v552, %v556
        %559 = vst [vmem:[#allocation2] sm:$0x3] 0.0
        %560 = vst [vmem:[#allocation2 + $0x12] sm:$0x3] 0.0
        %561 = vst [vmem:[#allocation2 + $0x2] sm:$0xff] %v557
        %562 = vst [vmem:[#allocation2 + $0xa] sm:$0xff] %v558
        %v563 = vld [vmem:[#allocation2] sm:$0xff]
        %v564 = vld [vmem:[#allocation2 + $0x8] sm:$0xff]
        %v565 = vld [vmem:[#allocation8] sm:$0xff]
        %v566 = vld [vmem:[#allocation8 + $0x8] sm:$0xff]
        %v567 = vld [vmem:[#allocation8 + $0x10] sm:$0xff]
        %v568 = vld [vmem:[#allocation8 + $0x18] sm:$0xff]
        %v569 = vld [vmem:[#allocation8 + $0x20] sm:$0xff]
        %v570 = vld [vmem:[#allocation8 + $0x28] sm:$0xff]
        %v571 = vld [vmem:[#allocation8 + $0x30] sm:$0xff]
        %v572 = vld [vmem:[#allocation8 + $0x38] sm:$0xff]
        %v573 = vld [vmem:[#allocation8 + $0x40] sm:$0xff]
        %v574 = vld [vmem:[#allocation8 + $0x48] sm:$0xff]
        %v575 = vld [vmem:[#allocation8 + $0x50] sm:$0xff]
        %v576 = vld [vmem:[#allocation8 + $0x58] sm:$0xff]
        %v577 = vld [vmem:[#allocation8 + $0x60] sm:$0xff]
        %v578 = vld [vmem:[#allocation8 + $0x68] sm:$0xff]
        %v579 = vld [vmem:[#allocation8 + $0x70] sm:$0xff]
        %v580 = vld [vmem:[#allocation8 + $0x78] sm:$0xff]
        %v581 = vld [vmem:[#allocation2 + $0x2] sm:$0xff]
        %v582 = vld [vmem:[#allocation2 + $0xa] sm:$0xff]
        %v583 = vld [vmem:[#allocation8 + $0x80] sm:$0xff]
        %v584 = vld [vmem:[#allocation8 + $0x88] sm:$0xff]
        %v585 = vld [vmem:[#allocation8 + $0x90] sm:$0xff]
        %v586 = vld [vmem:[#allocation8 + $0x98] sm:$0xff]
        %v587 = vld [vmem:[#allocation8 + $0xa0] sm:$0xff]
        %v588 = vld [vmem:[#allocation8 + $0xa8] sm:$0xff]
        %v589 = vld [vmem:[#allocation8 + $0xb0] sm:$0xff]
        %v590 = vld [vmem:[#allocation8 + $0xb8] sm:$0xff]
        %v591 = vld [vmem:[#allocation8 + $0xc0] sm:$0xff]
        %v592 = vld [vmem:[#allocation8 + $0xc8] sm:$0xff]
        %v593 = vld [vmem:[#allocation8 + $0xd0] sm:$0xff]
        %v594 = vld [vmem:[#allocation8 + $0xd8] sm:$0xff]
        %v595 = vld [vmem:[#allocation8 + $0xe0] sm:$0xff]
        %v596 = vld [vmem:[#allocation8 + $0xe8] sm:$0xff]
        %v597 = vld [vmem:[#allocation8 + $0xf0] sm:$0xff]
        %v598 = vld [vmem:[#allocation8 + $0xf8] sm:$0xff]
        %599 = vmatprep.subr.mxu0 0.0
        %600 = vmatpush1.msra.mxu0 %v598
        %601 = vmatprep.subr.mxu0 0.0
        %602 = vmatpush1.msra.mxu0 %v597
        %603 = vmatprep.subr.mxu0 0.0
        %604 = vmatpush1.msra.mxu0 %v596
        %605 = vmatprep.subr.mxu0 0.0
        %606 = vmatpush1.msra.mxu0 %v595
        %607 = vmatprep.subr.mxu0 0.0
        %608 = vmatpush1.msra.mxu0 %v594
        %609 = vmatprep.subr.mxu0 0.0
        %610 = vmatpush1.msra.mxu0 %v593
        %611 = vmatprep.subr.mxu0 0.0
        %612 = vmatpush1.msra.mxu0 %v592
        %613 = vmatprep.subr.mxu0 0.0
        %614 = vmatpush1.msra.mxu0 %v591
        %615 = vmatprep.subr.mxu0 0.0
        %616 = vmatpush1.msra.mxu0 %v590
        %617 = vmatprep.subr.mxu0 0.0
        %618 = vmatpush1.msra.mxu0 %v589
        %619 = vmatprep.subr.mxu0 0.0
        %620 = vmatpush1.msra.mxu0 %v588
        %621 = vmatprep.subr.mxu0 0.0
        %622 = vmatpush1.msra.mxu0 %v587
        %623 = vmatprep.subr.mxu0 0.0
        %624 = vmatpush1.msra.mxu0 %v586
        %625 = vmatprep.subr.mxu0 0.0
        %626 = vmatpush1.msra.mxu0 %v585
        %627 = vmatprep.subr.mxu0 0.0
        %628 = vmatpush1.msra.mxu0 %v584
        %629 = vmatprep.subr.mxu0 0.0
        %630 = vmatpush1.msra.mxu0 %v583
        %631 = vmatprep.subr.mxu0 0.0
        %632 = vmatpush2.msra.mxu0 0.0
        %633 = vmatprep.subr.mxu0 0.0
        %634 = vmatpush2.msra.mxu0 0.0
        %635 = vmatprep.subr.mxu0 0.0
        %636 = vmatpush2.msra.mxu0 0.0
        %637 = vmatprep.subr.mxu0 0.0
        %638 = vmatpush2.msra.mxu0 0.0
        %639 = vmatprep.subr.mxu0 0.0
        %640 = vmatpush2.msra.mxu0 0.0
        %641 = vmatprep.subr.mxu0 0.0
        %642 = vmatpush2.msra.mxu0 0.0
        %643 = vmatprep.subr.mxu0 0.0
        %644 = vmatpush2.msra.mxu0 0.0
        %645 = vmatprep.subr.mxu0 0.0
        %646 = vmatpush2.msra.mxu0 0.0
        %647 = vmatprep.subr.mxu0 0.0
        %648 = vmatpush2.msra.mxu0 0.0
        %649 = vmatprep.subr.mxu0 0.0
        %650 = vmatpush2.msra.mxu0 0.0
        %651 = vmatprep.subr.mxu0 0.0
        %652 = vmatpush2.msra.mxu0 0.0
        %653 = vmatprep.subr.mxu0 0.0
        %654 = vmatpush2.msra.mxu0 0.0
        %655 = vmatprep.subr.mxu0 0.0
        %656 = vmatpush2.msra.mxu0 0.0
        %657 = vmatprep.subr.mxu0 0.0
        %658 = vmatpush2.msra.mxu0 0.0
        %659 = vmatprep.subr.mxu0 0.0
        %660 = vmatpush2.msra.mxu0 0.0
        %661 = vmatprep.subr.mxu0 0.0
        %662 = vmatpush2.msra.mxu0 0.0
        %663 = vmatprep.mubr.f32.mxu0 0.0
        %664 = vmatmul.mubr.f32.gmra.mxu0 %v581
        %v665 = vpop.f32.mrf.mxu0
        %v666 = vadd.f32 0.0, %v665
        %v667 = vpop.f32.mrf.mxu0
        %668 = vmatprep.mubr.f32.mxu0 0.0
        %669 = vmatmul.mubr.f32.gmra.mxu0 %v582
        %v670 = vpop.f32.mrf.mxu0
        %v671 = vadd.f32 0.0, %v670
        %v672 = vpop.f32.mrf.mxu0
        %673 = vdwg.mxu0
        %674 = vmatprep.subr.mxu0 0.0
        %675 = vmatpush1.msra.mxu0 %v580
        %676 = vmatprep.subr.mxu0 0.0
        %677 = vmatpush1.msra.mxu0 %v579
        %678 = vmatprep.subr.mxu0 0.0
        %679 = vmatpush1.msra.mxu0 %v578
        %680 = vmatprep.subr.mxu0 0.0
        %681 = vmatpush1.msra.mxu0 %v577
        %682 = vmatprep.subr.mxu0 0.0
        %683 = vmatpush1.msra.mxu0 %v576
        %684 = vmatprep.subr.mxu0 0.0
        %685 = vmatpush1.msra.mxu0 %v575
        %686 = vmatprep.subr.mxu0 0.0
        %687 = vmatpush1.msra.mxu0 %v574
        %688 = vmatprep.subr.mxu0 0.0
        %689 = vmatpush1.msra.mxu0 %v573
        %690 = vmatprep.subr.mxu0 0.0
        %691 = vmatpush1.msra.mxu0 %v572
        %692 = vmatprep.subr.mxu0 0.0
        %693 = vmatpush1.msra.mxu0 %v571
        %694 = vmatprep.subr.mxu0 0.0
        %695 = vmatpush1.msra.mxu0 %v570
        %696 = vmatprep.subr.mxu0 0.0
        %697 = vmatpush1.msra.mxu0 %v569
        %698 = vmatprep.subr.mxu0 0.0
        %699 = vmatpush1.msra.mxu0 %v568
        %700 = vmatprep.subr.mxu0 0.0
        %701 = vmatpush1.msra.mxu0 %v567
        %702 = vmatprep.subr.mxu0 0.0
        %703 = vmatpush1.msra.mxu0 %v566
        %704 = vmatprep.subr.mxu0 0.0
        %705 = vmatpush1.msra.mxu0 %v565
        %706 = vmatprep.subr.mxu0 0.0
        %707 = vmatpush2.msra.mxu0 0.0
        %708 = vmatprep.subr.mxu0 0.0
        %709 = vmatpush2.msra.mxu0 0.0
        %710 = vmatprep.subr.mxu0 0.0
        %711 = vmatpush2.msra.mxu0 0.0
        %712 = vmatprep.subr.mxu0 0.0
        %713 = vmatpush2.msra.mxu0 0.0
        %714 = vmatprep.subr.mxu0 0.0
        %715 = vmatpush2.msra.mxu0 0.0
        %716 = vmatprep.subr.mxu0 0.0
        %717 = vmatpush2.msra.mxu0 0.0
        %718 = vmatprep.subr.mxu0 0.0
        %719 = vmatpush2.msra.mxu0 0.0
        %720 = vmatprep.subr.mxu0 0.0
        %721 = vmatpush2.msra.mxu0 0.0
        %722 = vmatprep.subr.mxu0 0.0
        %723 = vmatpush2.msra.mxu0 0.0
        %724 = vmatprep.subr.mxu0 0.0
        %725 = vmatpush2.msra.mxu0 0.0
        %726 = vmatprep.subr.mxu0 0.0
        %727 = vmatpush2.msra.mxu0 0.0
        %728 = vmatprep.subr.mxu0 0.0
        %729 = vmatpush2.msra.mxu0 0.0
        %730 = vmatprep.subr.mxu0 0.0
        %731 = vmatpush2.msra.mxu0 0.0
        %732 = vmatprep.subr.mxu0 0.0
        %733 = vmatpush2.msra.mxu0 0.0
        %734 = vmatprep.subr.mxu0 0.0
        %735 = vmatpush2.msra.mxu0 0.0
        %736 = vmatprep.subr.mxu0 0.0
        %737 = vmatpush2.msra.mxu0 0.0
        %738 = vmatprep.mubr.f32.mxu0 0.0
        %739 = vmatmul.mubr.f32.gmra.mxu0 %v563
        %v740 = vpop.f32.mrf.mxu0
        %v741 = vadd.f32 %v666, %v740
        %v742 = vpop.f32.mrf.mxu0
        %743 = vmatprep.mubr.f32.mxu0 0.0
        %744 = vmatmul.mubr.f32.gmra.mxu0 %v564
        %v745 = vpop.f32.mrf.mxu0
        %v746 = vadd.f32 %v671, %v745
        %v747 = vpop.f32.mrf.mxu0
        %748 = vdwg.mxu0
        %v749 = vld [vmem:[#allocation2 + $0x4] sm:$0xff]
        %v750 = vld [vmem:[#allocation2 + $0xc] sm:$0xff]
        %v751 = vld [vmem:[#allocation8 + $0x100] sm:$0xff]
        %v752 = vld [vmem:[#allocation8 + $0x108] sm:$0xff]
        %v753 = vld [vmem:[#allocation8 + $0x110] sm:$0xff]
        %v754 = vld [vmem:[#allocation8 + $0x118] sm:$0xff]
        %v755 = vld [vmem:[#allocation8 + $0x120] sm:$0xff]
        %v756 = vld [vmem:[#allocation8 + $0x128] sm:$0xff]
        %v757 = vld [vmem:[#allocation8 + $0x130] sm:$0xff]
        %v758 = vld [vmem:[#allocation8 + $0x138] sm:$0xff]
        %v759 = vld [vmem:[#allocation8 + $0x140] sm:$0xff]
        %v760 = vld [vmem:[#allocation8 + $0x148] sm:$0xff]
        %v761 = vld [vmem:[#allocation8 + $0x150] sm:$0xff]
        %v762 = vld [vmem:[#allocation8 + $0x158] sm:$0xff]
        %v763 = vld [vmem:[#allocation8 + $0x160] sm:$0xff]
        %v764 = vld [vmem:[#allocation8 + $0x168] sm:$0xff]
        %v765 = vld [vmem:[#allocation8 + $0x170] sm:$0xff]
        %v766 = vld [vmem:[#allocation8 + $0x178] sm:$0xff]
        %767 = vmatprep.subr.mxu0 0.0
        %768 = vmatpush1.msra.mxu0 %v766
        %769 = vmatprep.subr.mxu0 0.0
        %770 = vmatpush1.msra.mxu0 %v765
        %771 = vmatprep.subr.mxu0 0.0
        %772 = vmatpush1.msra.mxu0 %v764
        %773 = vmatprep.subr.mxu0 0.0
        %774 = vmatpush1.msra.mxu0 %v763
        %775 = vmatprep.subr.mxu0 0.0
        %776 = vmatpush1.msra.mxu0 %v762
        %777 = vmatprep.subr.mxu0 0.0
        %778 = vmatpush1.msra.mxu0 %v761
        %779 = vmatprep.subr.mxu0 0.0
        %780 = vmatpush1.msra.mxu0 %v760
        %781 = vmatprep.subr.mxu0 0.0
        %782 = vmatpush1.msra.mxu0 %v759
        %783 = vmatprep.subr.mxu0 0.0
        %784 = vmatpush1.msra.mxu0 %v758
        %785 = vmatprep.subr.mxu0 0.0
        %786 = vmatpush1.msra.mxu0 %v757
        %787 = vmatprep.subr.mxu0 0.0
        %788 = vmatpush1.msra.mxu0 %v756
        %789 = vmatprep.subr.mxu0 0.0
        %790 = vmatpush1.msra.mxu0 %v755
        %791 = vmatprep.subr.mxu0 0.0
        %792 = vmatpush1.msra.mxu0 %v754
        %793 = vmatprep.subr.mxu0 0.0
        %794 = vmatpush1.msra.mxu0 %v753
        %795 = vmatprep.subr.mxu0 0.0
        %796 = vmatpush1.msra.mxu0 %v752
        %797 = vmatprep.subr.mxu0 0.0
        %798 = vmatpush1.msra.mxu0 %v751
        %799 = vmatprep.subr.mxu0 0.0
        %800 = vmatpush2.msra.mxu0 0.0
        %801 = vmatprep.subr.mxu0 0.0
        %802 = vmatpush2.msra.mxu0 0.0
        %803 = vmatprep.subr.mxu0 0.0
        %804 = vmatpush2.msra.mxu0 0.0
        %805 = vmatprep.subr.mxu0 0.0
        %806 = vmatpush2.msra.mxu0 0.0
        %807 = vmatprep.subr.mxu0 0.0
        %808 = vmatpush2.msra.mxu0 0.0
        %809 = vmatprep.subr.mxu0 0.0
        %810 = vmatpush2.msra.mxu0 0.0
        %811 = vmatprep.subr.mxu0 0.0
        %812 = vmatpush2.msra.mxu0 0.0
        %813 = vmatprep.subr.mxu0 0.0
        %814 = vmatpush2.msra.mxu0 0.0
        %815 = vmatprep.subr.mxu0 0.0
        %816 = vmatpush2.msra.mxu0 0.0
        %817 = vmatprep.subr.mxu0 0.0
        %818 = vmatpush2.msra.mxu0 0.0
        %819 = vmatprep.subr.mxu0 0.0
        %820 = vmatpush2.msra.mxu0 0.0
        %821 = vmatprep.subr.mxu0 0.0
        %822 = vmatpush2.msra.mxu0 0.0
        %823 = vmatprep.subr.mxu0 0.0
        %824 = vmatpush2.msra.mxu0 0.0
        %825 = vmatprep.subr.mxu0 0.0
        %826 = vmatpush2.msra.mxu0 0.0
        %827 = vmatprep.subr.mxu0 0.0
        %828 = vmatpush2.msra.mxu0 0.0
        %829 = vmatprep.subr.mxu0 0.0
        %830 = vmatpush2.msra.mxu0 0.0
        %831 = vmatprep.mubr.f32.mxu0 0.0
        %832 = vmatmul.mubr.f32.gmra.mxu0 %v749
        %v833 = vpop.f32.mrf.mxu0
        %v834 = vadd.f32 0.0, %v833
        %v835 = vpop.f32.mrf.mxu0
        %836 = vmatprep.mubr.f32.mxu0 0.0
        %837 = vmatmul.mubr.f32.gmra.mxu0 %v750
        %v838 = vpop.f32.mrf.mxu0
        %v839 = vadd.f32 0.0, %v838
        %v840 = vpop.f32.mrf.mxu0
        %841 = vdwg.mxu0
        %v842 = vadd.f32 %v741, %v834
        %v843 = vadd.f32 %v746, %v839
        %v844 = vld [vmem:[%s4 + $0x2] sm:$0x1]
        %v845 = vlaneseq
        %v846 = vshrl.u32 %v845, 7
        %v847 = vsub.s32 0, %v846
        %v848 = vrot.slane %v844, %v847
        %v849 = vmul.f32 %v842, %v848
        %v850 = vmul.f32 %v843, %v848
        %v851 = vld [vmem:[%s4 + $0x3] sm:$0x1]
        %v852 = vlaneseq
        %v853 = vshrl.u32 %v852, 7
        %v854 = vsub.s32 0, %v853
        %v855 = vrot.slane %v851, %v854
        %v856 = vadd.f32 %v849, %v855
        %v857 = vadd.f32 %v850, %v855
        %vm858 = vcmp.ge.f32.partialorder %v856, 0.0
        %vm859 = vcmp.ge.f32.partialorder %v857, 0.0
        %v860 = vmul.f32 %v856, 0.05
        %v861 = vmul.f32 %v857, 0.05
        %v862 = vsel %vm858, %v856, %v860
        %v863 = vsel %vm859, %v857, %v861
        %v864 = vld [vmem:[#allocation9] sm:$0xff]
        %v865 = vld [vmem:[#allocation9 + $0x8] sm:$0xff]
        %v866 = vld [vmem:[#allocation9 + $0x10] sm:$0xff]
        %v867 = vld [vmem:[#allocation9 + $0x18] sm:$0xff]
        %v868 = vld [vmem:[#allocation9 + $0x20] sm:$0xff]
        %v869 = vld [vmem:[#allocation9 + $0x28] sm:$0xff]
        %v870 = vld [vmem:[#allocation9 + $0x30] sm:$0xff]
        %v871 = vld [vmem:[#allocation9 + $0x38] sm:$0xff]
        %v872 = vld [vmem:[#allocation9 + $0x40] sm:$0xff]
        %v873 = vld [vmem:[#allocation9 + $0x48] sm:$0xff]
        %v874 = vld [vmem:[#allocation9 + $0x50] sm:$0xff]
        %v875 = vld [vmem:[#allocation9 + $0x58] sm:$0xff]
        %v876 = vld [vmem:[#allocation9 + $0x60] sm:$0xff]
        %v877 = vld [vmem:[#allocation9 + $0x68] sm:$0xff]
        %v878 = vld [vmem:[#allocation9 + $0x70] sm:$0xff]
        %v879 = vld [vmem:[#allocation9 + $0x78] sm:$0xff]
        %v880 = vld [vmem:[#allocation9 + $0x80] sm:$0xff]
        %v881 = vld [vmem:[#allocation9 + $0x88] sm:$0xff]
        %v882 = vld [vmem:[#allocation9 + $0x90] sm:$0xff]
        %v883 = vld [vmem:[#allocation9 + $0x98] sm:$0xff]
        %v884 = vld [vmem:[#allocation9 + $0xa0] sm:$0xff]
        %v885 = vld [vmem:[#allocation9 + $0xa8] sm:$0xff]
        %v886 = vld [vmem:[#allocation9 + $0xb0] sm:$0xff]
        %v887 = vld [vmem:[#allocation9 + $0xb8] sm:$0xff]
        %v888 = vld [vmem:[#allocation9 + $0xc0] sm:$0xff]
        %v889 = vld [vmem:[#allocation9 + $0xc8] sm:$0xff]
        %v890 = vld [vmem:[#allocation9 + $0xd0] sm:$0xff]
        %v891 = vld [vmem:[#allocation9 + $0xd8] sm:$0xff]
        %v892 = vld [vmem:[#allocation9 + $0xe0] sm:$0xff]
        %v893 = vld [vmem:[#allocation9 + $0xe8] sm:$0xff]
        %v894 = vld [vmem:[#allocation9 + $0xf0] sm:$0xff]
        %v895 = vld [vmem:[#allocation9 + $0xf8] sm:$0xff]
        %v896 = vld [vmem:[#allocation9 + $0x100] sm:$0xff]
        %v897 = vld [vmem:[#allocation9 + $0x108] sm:$0xff]
        %v898 = vld [vmem:[#allocation9 + $0x110] sm:$0xff]
        %v899 = vld [vmem:[#allocation9 + $0x118] sm:$0xff]
        %v900 = vld [vmem:[#allocation9 + $0x120] sm:$0xff]
        %v901 = vld [vmem:[#allocation9 + $0x128] sm:$0xff]
        %v902 = vld [vmem:[#allocation9 + $0x130] sm:$0xff]
        %v903 = vld [vmem:[#allocation9 + $0x138] sm:$0xff]
        %v904 = vld [vmem:[#allocation9 + $0x140] sm:$0xff]
        %v905 = vld [vmem:[#allocation9 + $0x148] sm:$0xff]
        %v906 = vld [vmem:[#allocation9 + $0x150] sm:$0xff]
        %v907 = vld [vmem:[#allocation9 + $0x158] sm:$0xff]
        %v908 = vld [vmem:[#allocation9 + $0x160] sm:$0xff]
        %v909 = vld [vmem:[#allocation9 + $0x168] sm:$0xff]
        %v910 = vld [vmem:[#allocation9 + $0x170] sm:$0xff]
        %v911 = vld [vmem:[#allocation9 + $0x178] sm:$0xff]
        %v912 = vld [vmem:[#allocation9 + $0x180] sm:$0xff]
        %v913 = vld [vmem:[#allocation9 + $0x188] sm:$0xff]
        %v914 = vld [vmem:[#allocation9 + $0x190] sm:$0xff]
        %v915 = vld [vmem:[#allocation9 + $0x198] sm:$0xff]
        %v916 = vld [vmem:[#allocation9 + $0x1a0] sm:$0xff]
        %v917 = vld [vmem:[#allocation9 + $0x1a8] sm:$0xff]
        %v918 = vld [vmem:[#allocation9 + $0x1b0] sm:$0xff]
        %v919 = vld [vmem:[#allocation9 + $0x1b8] sm:$0xff]
        %v920 = vld [vmem:[#allocation9 + $0x1c0] sm:$0xff]
        %v921 = vld [vmem:[#allocation9 + $0x1c8] sm:$0xff]
        %v922 = vld [vmem:[#allocation9 + $0x1d0] sm:$0xff]
        %v923 = vld [vmem:[#allocation9 + $0x1d8] sm:$0xff]
        %v924 = vld [vmem:[#allocation9 + $0x1e0] sm:$0xff]
        %v925 = vld [vmem:[#allocation9 + $0x1e8] sm:$0xff]
        %v926 = vld [vmem:[#allocation9 + $0x1f0] sm:$0xff]
        %v927 = vld [vmem:[#allocation9 + $0x1f8] sm:$0xff]
        %v928 = vld [vmem:[%s5] sm:$0xf]
        %v930 = vlaneseq
        %v931 = vshrl.u32 %v930, 7
        %v932 = vsub.s32 0, %v931
        %v933 = vrot.slane %v928, %v932
        %v934 = vlaneseq
        %v935 = vshrl.u32 %v934, 7
        %v936 = vsub.s32 1, %v935
        %v937 = vrot.slane %v928, %v936
        %v938 = vlaneseq
        %v939 = vshrl.u32 %v938, 7
        %v940 = vsub.s32 2, %v939
        %v941 = vrot.slane %v928, %v940
        %v942 = vlaneseq
        %v943 = vshrl.u32 %v942, 7
        %v944 = vsub.s32 3, %v943
        %v945 = vrot.slane %v928, %v944
        %950 = vmatprep.subr.mxu0 %v925
        %951 = vmatpush1.msra.mxu0 %v924
        %952 = vmatprep.subr.mxu0 %v921
        %953 = vmatpush1.msra.mxu0 %v920
        %954 = vmatprep.subr.mxu0 %v917
        %955 = vmatpush1.msra.mxu0 %v916
        %956 = vmatprep.subr.mxu0 %v913
        %957 = vmatpush1.msra.mxu0 %v912
        %958 = vmatprep.subr.mxu0 %v909
        %959 = vmatpush1.msra.mxu0 %v908
        %960 = vmatprep.subr.mxu0 %v905
        %961 = vmatpush1.msra.mxu0 %v904
        %962 = vmatprep.subr.mxu0 %v901
        %963 = vmatpush1.msra.mxu0 %v900
        %964 = vmatprep.subr.mxu0 %v897
        %965 = vmatpush1.msra.mxu0 %v896
        %966 = vmatprep.subr.mxu0 %v893
        %967 = vmatpush1.msra.mxu0 %v892
        %968 = vmatprep.subr.mxu0 %v889
        %969 = vmatpush1.msra.mxu0 %v888
        %970 = vmatprep.subr.mxu0 %v885
        %971 = vmatpush1.msra.mxu0 %v884
        %972 = vmatprep.subr.mxu0 %v881
        %973 = vmatpush1.msra.mxu0 %v880
        %974 = vmatprep.subr.mxu0 %v877
        %975 = vmatpush1.msra.mxu0 %v876
        %976 = vmatprep.subr.mxu0 %v873
        %977 = vmatpush1.msra.mxu0 %v872
        %978 = vmatprep.subr.mxu0 %v869
        %979 = vmatpush1.msra.mxu0 %v868
        %980 = vmatprep.subr.mxu0 %v865
        %981 = vmatpush1.msra.mxu0 %v864
        %982 = vmatprep.subr.mxu0 0.0
        %983 = vmatpush2.msra.mxu0 0.0
        %984 = vmatprep.subr.mxu0 0.0
        %985 = vmatpush2.msra.mxu0 0.0
        %986 = vmatprep.subr.mxu0 0.0
        %987 = vmatpush2.msra.mxu0 0.0
        %988 = vmatprep.subr.mxu0 0.0
        %989 = vmatpush2.msra.mxu0 0.0
        %990 = vmatprep.subr.mxu0 0.0
        %991 = vmatpush2.msra.mxu0 0.0
        %992 = vmatprep.subr.mxu0 0.0
        %993 = vmatpush2.msra.mxu0 0.0
        %994 = vmatprep.subr.mxu0 0.0
        %995 = vmatpush2.msra.mxu0 0.0
        %996 = vmatprep.subr.mxu0 0.0
        %997 = vmatpush2.msra.mxu0 0.0
        %998 = vmatprep.subr.mxu0 0.0
        %999 = vmatpush2.msra.mxu0 0.0
        %1000 = vmatprep.subr.mxu0 0.0
        %1001 = vmatpush2.msra.mxu0 0.0
        %1002 = vmatprep.subr.mxu0 0.0
        %1003 = vmatpush2.msra.mxu0 0.0
        %1004 = vmatprep.subr.mxu0 0.0
        %1005 = vmatpush2.msra.mxu0 0.0
        %1006 = vmatprep.subr.mxu0 0.0
        %1007 = vmatpush2.msra.mxu0 0.0
        %1008 = vmatprep.subr.mxu0 0.0
        %1009 = vmatpush2.msra.mxu0 0.0
        %1010 = vmatprep.subr.mxu0 0.0
        %1011 = vmatpush2.msra.mxu0 0.0
        %1012 = vmatprep.subr.mxu0 0.0
        %1013 = vmatpush2.msra.mxu0 0.0
        %1014 = vmatprep.mubr.f32.mxu0 0.0
        %1015 = vmatmul.mubr.f32.gmra.mxu0 %v862
        %v1016 = vpop.f32.mrf.mxu0
        %v1017 = vadd.f32 %v933, %v1016
        %v1018 = vpop.f32.mrf.mxu0
        %v1019 = vadd.f32 %v937, %v1018
        %1020 = vmatprep.mubr.f32.mxu0 0.0
        %1021 = vmatmul.mubr.f32.gmra.mxu0 %v863
        %v1022 = vpop.f32.mrf.mxu0
        %v1023 = vadd.f32 %v933, %v1022
        %v1024 = vpop.f32.mrf.mxu0
        %v1025 = vadd.f32 %v937, %v1024
        %1026 = vdwg.mxu0
        %1027 = vmatprep.subr.mxu0 %v927
        %1028 = vmatpush1.msra.mxu0 %v926
        %1029 = vmatprep.subr.mxu0 %v923
        %1030 = vmatpush1.msra.mxu0 %v922
        %1031 = vmatprep.subr.mxu0 %v919
        %1032 = vmatpush1.msra.mxu0 %v918
        %1033 = vmatprep.subr.mxu0 %v915
        %1034 = vmatpush1.msra.mxu0 %v914
        %1035 = vmatprep.subr.mxu0 %v911
        %1036 = vmatpush1.msra.mxu0 %v910
        %1037 = vmatprep.subr.mxu0 %v907
        %1038 = vmatpush1.msra.mxu0 %v906
        %1039 = vmatprep.subr.mxu0 %v903
        %1040 = vmatpush1.msra.mxu0 %v902
        %1041 = vmatprep.subr.mxu0 %v899
        %1042 = vmatpush1.msra.mxu0 %v898
        %1043 = vmatprep.subr.mxu0 %v895
        %1044 = vmatpush1.msra.mxu0 %v894
        %1045 = vmatprep.subr.mxu0 %v891
        %1046 = vmatpush1.msra.mxu0 %v890
        %1047 = vmatprep.subr.mxu0 %v887
        %1048 = vmatpush1.msra.mxu0 %v886
        %1049 = vmatprep.subr.mxu0 %v883
        %1050 = vmatpush1.msra.mxu0 %v882
        %1051 = vmatprep.subr.mxu0 %v879
        %1052 = vmatpush1.msra.mxu0 %v878
        %1053 = vmatprep.subr.mxu0 %v875
        %1054 = vmatpush1.msra.mxu0 %v874
        %1055 = vmatprep.subr.mxu0 %v871
        %1056 = vmatpush1.msra.mxu0 %v870
        %1057 = vmatprep.subr.mxu0 %v867
        %1058 = vmatpush1.msra.mxu0 %v866
        %1059 = vmatprep.subr.mxu0 0.0
        %1060 = vmatpush2.msra.mxu0 0.0
        %1061 = vmatprep.subr.mxu0 0.0
        %1062 = vmatpush2.msra.mxu0 0.0
        %1063 = vmatprep.subr.mxu0 0.0
        %1064 = vmatpush2.msra.mxu0 0.0
        %1065 = vmatprep.subr.mxu0 0.0
        %1066 = vmatpush2.msra.mxu0 0.0
        %1067 = vmatprep.subr.mxu0 0.0
        %1068 = vmatpush2.msra.mxu0 0.0
        %1069 = vmatprep.subr.mxu0 0.0
        %1070 = vmatpush2.msra.mxu0 0.0
        %1071 = vmatprep.subr.mxu0 0.0
        %1072 = vmatpush2.msra.mxu0 0.0
        %1073 = vmatprep.subr.mxu0 0.0
        %1074 = vmatpush2.msra.mxu0 0.0
        %1075 = vmatprep.subr.mxu0 0.0
        %1076 = vmatpush2.msra.mxu0 0.0
        %1077 = vmatprep.subr.mxu0 0.0
        %1078 = vmatpush2.msra.mxu0 0.0
        %1079 = vmatprep.subr.mxu0 0.0
        %1080 = vmatpush2.msra.mxu0 0.0
        %1081 = vmatprep.subr.mxu0 0.0
        %1082 = vmatpush2.msra.mxu0 0.0
        %1083 = vmatprep.subr.mxu0 0.0
        %1084 = vmatpush2.msra.mxu0 0.0
        %1085 = vmatprep.subr.mxu0 0.0
        %1086 = vmatpush2.msra.mxu0 0.0
        %1087 = vmatprep.subr.mxu0 0.0
        %1088 = vmatpush2.msra.mxu0 0.0
        %1089 = vmatprep.subr.mxu0 0.0
        %1090 = vmatpush2.msra.mxu0 0.0
        %1091 = vmatprep.mubr.f32.mxu0 0.0
        %1092 = vmatmul.mubr.f32.gmra.mxu0 %v862
        %v1093 = vpop.f32.mrf.mxu0
        %v1094 = vadd.f32 %v941, %v1093
        %v1095 = vpop.f32.mrf.mxu0
        %v1096 = vadd.f32 %v945, %v1095
        %1097 = vmatprep.mubr.f32.mxu0 0.0
        %1098 = vmatmul.mubr.f32.gmra.mxu0 %v863
        %v1099 = vpop.f32.mrf.mxu0
        %v1100 = vadd.f32 %v941, %v1099
        %v1101 = vpop.f32.mrf.mxu0
        %v1102 = vadd.f32 %v945, %v1101
        %1103 = vdwg.mxu0
        %1104 = vst [vmem:[%s314] sm:$0xff] %v1017
        %1105 = vst [vmem:[%s314 + $0x8] sm:$0xff] %v1019
        %1106 = vst [vmem:[%s314 + $0x10] sm:$0xff] %v1094
        %1107 = vst [vmem:[%s314 + $0x18] sm:$0xff] %v1096
        %1108 = vst [vmem:[%s314 + $0x20] sm:$0xff] %v1023
        %1109 = vst [vmem:[%s314 + $0x28] sm:$0xff] %v1025
        %1110 = vst [vmem:[%s314 + $0x30] sm:$0xff] %v1100
        %1111 = vst [vmem:[%s314 + $0x38] sm:$0xff] %v1102
        %s1112 = sand.u32 %s164, 1
        %s1113 = scalar_lea.sflag [#allocation5], %s1112
        %s1114 = sand.u32 %s164, 1
        %s1115 = smul.addr %s1114, 64
        %s1116 = scalar_lea.vmem [#allocation11], %s1115
        // Predicated region
        $region61: #{tpu_custom_call.1} parent=43 // pred_check
          %p1117 = pneg %p174
        $region62: #{tpu_custom_call.1} parent=43 // pred_check_branch
          %1119 = sbr.rel (%p1117) target = $region64
        $region63: #{tpu_custom_call.1} parent=43 // pred_region
          %s1120 = smul.u32 2, %s25
          %s1122 = ssub.s32 1024, 1024
          %1123 = vsyncadd %s1113, %s1122
          %s1124 = smul.addr %s1120, 4
          %s1125 = smul.addr %s1124, 128
          %s1126 = scalar_lea.hbm %s6, %s1125
          %s1127 = sshll.u32 %s1116, 4
          %s1128 = int_to_ptr.vmem [resolvable:$true] %s1127
          %1133 = dma.vmem_to_hbm [thread:$0]  %s1128, 1024, %s1126, %s1113, 512, 512, 32
        $region64: #{tpu_custom_call.1} parent=43 // pred_fallthru
          _
      $region44: #{tpu_custom_call.1} parent=5 // pred_fallthru
        _
      %p1134 = scmp.le.s32.totalorder 2, %s20
      // Predicated region
      $region65: #{tpu_custom_call.1} parent=5 // pred_check
        %p1135 = pneg %p1134
      $region66: #{tpu_custom_call.1} parent=5 // pred_check_branch
        %1137 = sbr.rel (%p1135) target = $region68
      $region67: #{tpu_custom_call.1} parent=5 // pred_region
        %s1138 = ssub.s32 %s20, 2
        // Predicated region
        $region69: #{tpu_custom_call.1} parent=67 // pred_check
          %p1139 = pneg %p180
        $region70: #{tpu_custom_call.1} parent=67 // pred_check_branch
          %1141 = sbr.rel (%p1139) target = $region72
        $region71: #{tpu_custom_call.1} parent=67 // pred_region
          %s1142 = sand.u32 %s165, 1
          %s1143 = scalar_lea.sflag [#allocation5], %s1142
          %s1144 = sand.u32 %s165, 1
          %s1145 = smul.addr %s1144, 64
          %s1146 = scalar_lea.vmem [#allocation11], %s1145
          %1147 = dma.done %s1143, 1024
        $region72: #{tpu_custom_call.1} parent=67 // pred_fallthru
          _
      $region68: #{tpu_custom_call.1} parent=5 // pred_fallthru
        _
    $region6: #{tpu_custom_call.1} parent=1 // loop_footer
      %s24 = sadd.s32 1, %s20
    $region7: #{tpu_custom_call.1} parent=1 // loop_footer_branch
      %19 = sbr.rel target = $region3
    $region8: #{tpu_custom_call.1} parent=1 // loop_exit
      _
    %1148 = vsyncpa [#allocation4], 1
    %s1149 = scalar_lea.sflag [#allocation4], 1
    %1150 = vsyncpa %s1149, 1
    %1151 = vsyncpa [#allocation7], 1
    %1152 = vsyncpa [#allocation10], 1
    %1153 = vsyncpa [#allocation5], 1
    %s1154 = scalar_lea.sflag [#allocation5], 1
    %1155 = vsyncpa %s1154, 1

</llo_original>
